<compile_context>
chip_gen: v5e
topology: v5e:2x2
jax: 0.10.0
libtpu: 0.0.40
codegen_flags: <defaults>
</compile_context>

<pallas_src>
import jax
import jax.numpy as jnp
from jax.experimental import pallas as pl
from jax.experimental.pallas import tpu as pltpu

EPS = 1e-5
SEQ_LEN = 104
PRED_LEN = 60
ENC_IN = 7

_SINGLE_STEP_MAX_ROWS = 1024   # below this: grid=(1,), zero extra per-step overhead
_ROW_BLOCK_LARGE = 2048        # block size for large row counts (VMEM-safe on v7x)


def ltboost_fwd_kernel(x_ref, lw_ref, lb_ref, rv_ref, o_ref):
    # x_ref : (R, L)     rows = independent (batch, channel) series, time on lanes
    # lw_ref: (L, Ppad)  Linear weight, pre-transposed + lane-padded (f32)
    # lb_ref: (1, Ppad)  Linear bias, lane-padded (f32)
    # rv_ref: (R, 2)     per-row RevIN affine (weight, bias) packed (f32)
    # o_ref : (R, Ppad)
    x = x_ref[...].astype(jnp.float32)                        # (R, L)
    L = x.shape[-1]

    # ---- Model.forward step 1: subtract last time step ------------------
    seq_last = x[:, L - 1:L]                                   # (R, 1)
    xs = x - seq_last

    # ---- RevIN 'norm' statistics over time (lane-axis reduce -> XLU) ----
    mean = jnp.mean(xs, axis=-1, keepdims=True)                # (R, 1)
    d = xs - mean
    var = jnp.mean(d * d, axis=-1, keepdims=True)              # unbiased=False
    inv_std = jax.lax.rsqrt(var + EPS)                         # EUP slot
    stdev = jnp.sqrt(var + EPS)                                # saved stats

    rw = rv_ref[:, 0:1]                                        # (R, 1)
    rb = rv_ref[:, 1:2]                                        # (R, 1)

    # Folded normalize + affine: (xs - mean)/std * w + b  ==  d*scale_n + b
    xn = d * (rw * inv_std) + rb                               # one FMA pass

    # ---- Linear over time: out[r, p] = sum_l xn[r, l] * W[l, p] + b[p] --
    out = jax.lax.dot_general(
        xn, lw_ref[...],
        dimension_numbers=(((1,), (0,)), ((), ())),            # K on RHS sublanes
        preferred_element_type=jnp.float32)                    # (R, Ppad) on MXU
    out = out + lb_ref[...]                                    # (1, Ppad) bcast

    # ---- Folded RevIN 'denorm' + add back seq_last -----------------------
    #   y = (out - b)/(w + eps^2) * std + mean + seq_last
    scale_d = stdev * pl.reciprocal(rw + EPS * EPS, approx=False)   # (R, 1)
    shift_d = mean + seq_last - rb * scale_d                        # (R, 1)
    o_ref[...] = (out * scale_d + shift_d).astype(o_ref.dtype)


def ltboost_forward(x, lin_w, lin_b, rev_w, rev_b, *, row_block=None):
    """Fused LTBoost forward. x: (B, L, C) -> (B, P, C)."""
    B, L, C = x.shape
    P, L2 = lin_w.shape
    assert L2 == L, (L2, L)
    rows = B * C
    p_pad = 128 * (-(-P // 128))                  # pad output width to full lanes

    # Lane-dense layout: time axis onto lanes; every row is an independent
    # (batch, channel) series, so row-blocking never crosses batch boundaries.
    x2 = jnp.transpose(x, (0, 2, 1)).reshape(rows, L)

    # Pack per-row RevIN affine params into one (rows, 2) buffer.
    rv2 = jnp.tile(
        jnp.stack([rev_w.astype(jnp.float32), rev_b.astype(jnp.float32)],
                  axis=-1).reshape(1, C, 2),
        (B, 1, 1)).reshape(rows, 2)

    # Pre-transpose weight to (L, P) and zero-pad N to a full 128-lane slab.
    lw2 = jnp.zeros((L, p_pad), jnp.float32).at[:, :P].set(
        lin_w.astype(jnp.float32).T)
    lb2 = jnp.zeros((1, p_pad), jnp.float32).at[0, :P].set(
        lin_b.astype(jnp.float32))

    # Grid / block heuristic: one step for small problems; fixed VMEM-safe
    # blocks (multiple of 8 rows) only when rows is large.
    if row_block is None:
        row_block = rows if rows <= _SINGLE_STEP_MAX_ROWS else _ROW_BLOCK_LARGE
    num_blocks = pl.cdiv(rows, row_block)
    rows_padded = num_blocks * row_block
    if rows_padded != rows:
        x2 = jnp.pad(x2, ((0, rows_padded - rows), (0, 0)))
        rv2 = jnp.pad(rv2, ((0, rows_padded - rows), (0, 0)), constant_values=1.0)

    out2 = pl.pallas_call(
        ltboost_fwd_kernel,
        out_shape=jax.ShapeDtypeStruct((rows_padded, p_pad), x.dtype),
        grid_spec=pltpu.PrefetchScalarGridSpec(
            num_scalar_prefetch=0,
            grid=(num_blocks,),
            in_specs=[
                pl.BlockSpec((row_block, L), lambda i: (i, 0)),
                pl.BlockSpec((L, p_pad), lambda i: (0, 0)),
                pl.BlockSpec((1, p_pad), lambda i: (0, 0)),
                pl.BlockSpec((row_block, 2), lambda i: (i, 0)),
            ],
            out_specs=pl.BlockSpec((row_block, p_pad), lambda i: (i, 0)),
        ),
        compiler_params=pltpu.CompilerParams(
            dimension_semantics=("parallel",),
            # Let XLA fuse the (B,L,C)->(B*C,L) transpose into the input DMA.
            allow_input_fusion=[True, False, False, False]),
    )(x2, lw2, lb2, rv2)

    # (rows_padded, Ppad) -> (B, P, C); the row/lane un-padding slice rides on
    # the reshape/transpose that is needed anyway.
    return out2[:rows, :P].reshape(B, C, P).transpose(0, 2, 1)


# TODO(synk): the LightGBM boosting stage (Model.train / Model.predict tree
# residuals) and the inactive individual=True per-channel Linear branch are
# not part of Model.forward and have no Pallas equivalent; they are omitted.


if __name__ == "__main__":
    B, L, C, P = 4, SEQ_LEN, ENC_IN, PRED_LEN

    key = jax.random.PRNGKey(0)
    kx, kw, kb, krw, krb = jax.random.split(key, 5)
    x = jax.random.normal(kx, (B, L, C), dtype=jnp.float32) * 3.0 + 1.5

    # Linear init (PyTorch default: U(-1/sqrt(in), 1/sqrt(in))).
    bound = 1.0 / (L ** 0.5)
    lin_w = jax.random.uniform(kw, (P, L), jnp.float32, -bound, bound)
    lin_b = jax.random.uniform(kb, (P,), jnp.float32, -bound, bound)
    # RevIN affine params start at ones/zeros in the module; perturb slightly so
    # the affine and inverse-affine paths are genuinely exercised.
    rev_w = 1.0 + 0.1 * jax.random.normal(krw, (C,), jnp.float32)
    rev_b = 0.05 * jax.random.normal(krb, (C,), jnp.float32)

    y = ltboost_forward(x, lin_w, lin_b, rev_w, rev_b)
    jax.block_until_ready(y)

    # Pure-JAX reference mirroring the PyTorch forward exactly.
    seq_last = x[:, -1:, :]
    xs = x - seq_last
    mean = jnp.mean(xs, axis=1, keepdims=True)
    std = jnp.sqrt(jnp.var(xs, axis=1, keepdims=True) + EPS)
    xn = (xs - mean) / std * rev_w + rev_b
    out = jnp.einsum("blc,pl->bpc", xn, lin_w,
                     precision=jax.lax.Precision.HIGHEST)
    out = out + lin_b[None, :, None]
    out = (out - rev_b) / (rev_w + EPS * EPS) * std + mean
    y_ref = out + seq_last

    assert y.shape == (B, P, C), y.shape
    max_err = float(jnp.max(jnp.abs(y - y_ref)))
    assert jnp.allclose(y, y_ref, atol=1e-3, rtol=1e-3), max_err

    print("KERNEL_OK")
</pallas_src>

<mosaic_0001>
module attributes {stable_mosaic.version = 11 : i64} {
  func.func @ltboost_fwd_kernel(%arg0: i32, %arg1: memref<28x104xf32, #tpu.memory_space<vmem>>, %arg2: memref<104x128xf32, #tpu.memory_space<vmem>>, %arg3: memref<1x128xf32, #tpu.memory_space<vmem>>, %arg4: memref<28x2xf32, #tpu.memory_space<vmem>>, %arg5: memref<28x128xf32, #tpu.memory_space<vmem>>) attributes {dimension_semantics = [#tpu.dimension_semantics<parallel>], iteration_bounds = array<i64: 1>, scalar_prefetch = 0 : i64, scratch_operands = 0 : i64, tpu.core_type = #tpu.core_type<tc>, window_params = [{transform_indices = @transform_0, window_bounds = array<i64: 28, 104>}, {pipeline_mode = #tpu.pipeline_mode<synchronous>, transform_indices = @transform_1, window_bounds = array<i64: 104, 128>}, {pipeline_mode = #tpu.pipeline_mode<synchronous>, transform_indices = @transform_2, window_bounds = array<i64: 1, 128>}, {transform_indices = @transform_3, window_bounds = array<i64: 28, 2>}, {transform_indices = @transform_4, window_bounds = array<i64: 28, 128>}]} {
    %c0 = arith.constant 0 : index
    %c0_0 = arith.constant 0 : index
    %0 = vector.load %arg1[%c0, %c0_0] : memref<28x104xf32, #tpu.memory_space<vmem>>, vector<28x104xf32>
    %1 = vector.extract_strided_slice %0 {offsets = [0, 103], sizes = [28, 1], strides = [1, 1]} : vector<28x104xf32> to vector<28x1xf32>
    %2 = vector.broadcast %1 : vector<28x1xf32> to vector<28x104xf32>
    %3 = arith.subf %0, %2 : vector<28x104xf32>
    %cst = arith.constant dense<0.000000e+00> : vector<28xf32>
    %4 = vector.multi_reduction <add>, %3, %cst [1] : vector<28x104xf32> to vector<28xf32>
    %5 = vector.shape_cast %4 : vector<28xf32> to vector<28x1xf32>
    %cst_1 = arith.constant 1.040000e+02 : f32
    %6 = vector.broadcast %cst_1 : f32 to vector<28x1xf32>
    %7 = arith.divf %5, %6 : vector<28x1xf32>
    %8 = vector.broadcast %7 : vector<28x1xf32> to vector<28x104xf32>
    %9 = arith.subf %3, %8 : vector<28x104xf32>
    %10 = arith.mulf %9, %9 : vector<28x104xf32>
    %cst_2 = arith.constant dense<0.000000e+00> : vector<28xf32>
    %11 = vector.multi_reduction <add>, %10, %cst_2 [1] : vector<28x104xf32> to vector<28xf32>
    %12 = vector.shape_cast %11 : vector<28xf32> to vector<28x1xf32>
    %cst_3 = arith.constant 1.040000e+02 : f32
    %13 = vector.broadcast %cst_3 : f32 to vector<28x1xf32>
    %14 = arith.divf %12, %13 : vector<28x1xf32>
    %cst_4 = arith.constant 9.99999974E-6 : f32
    %15 = vector.broadcast %cst_4 : f32 to vector<28x1xf32>
    %16 = arith.addf %14, %15 : vector<28x1xf32>
    %17 = math.rsqrt %16 : vector<28x1xf32>
    %cst_5 = arith.constant 9.99999974E-6 : f32
    %18 = vector.broadcast %cst_5 : f32 to vector<28x1xf32>
    %19 = arith.addf %14, %18 : vector<28x1xf32>
    %20 = math.sqrt %19 : vector<28x1xf32>
    %c0_6 = arith.constant 0 : index
    %c0_7 = arith.constant 0 : index
    %21 = vector.load %arg4[%c0_6, %c0_7] : memref<28x2xf32, #tpu.memory_space<vmem>>, vector<28x1xf32>
    %c0_8 = arith.constant 0 : index
    %c1 = arith.constant 1 : index
    %22 = vector.load %arg4[%c0_8, %c1] : memref<28x2xf32, #tpu.memory_space<vmem>>, vector<28x1xf32>
    %23 = arith.mulf %21, %17 : vector<28x1xf32>
    %24 = vector.broadcast %23 : vector<28x1xf32> to vector<28x104xf32>
    %25 = arith.mulf %9, %24 : vector<28x104xf32>
    %26 = vector.broadcast %22 : vector<28x1xf32> to vector<28x104xf32>
    %27 = arith.addf %25, %26 : vector<28x104xf32>
    %c0_9 = arith.constant 0 : index
    %c0_10 = arith.constant 0 : index
    %28 = vector.load %arg2[%c0_9, %c0_10] : memref<104x128xf32, #tpu.memory_space<vmem>>, vector<104x128xf32>
    %cst_11 = arith.constant dense<0.000000e+00> : vector<28x128xf32>
    %29 = tpu.matmul %27, %28, %cst_11 {dimension_numbers = #tpu.dot_dimension_numbers<[1], [0], [0], [1], [0, 0, 1, 1], [], []>} : vector<28x104xf32>, vector<104x128xf32>, vector<28x128xf32> -> vector<28x128xf32>
    %c0_12 = arith.constant 0 : index
    %c0_13 = arith.constant 0 : index
    %30 = vector.load %arg3[%c0_12, %c0_13] : memref<1x128xf32, #tpu.memory_space<vmem>>, vector<1x128xf32>
    %31 = vector.broadcast %30 : vector<1x128xf32> to vector<28x128xf32>
    %32 = arith.addf %29, %31 : vector<28x128xf32>
    %cst_14 = arith.constant 1.000000e-10 : f32
    %33 = vector.broadcast %cst_14 : f32 to vector<28x1xf32>
    %34 = arith.addf %21, %33 : vector<28x1xf32>
    %35 = tpu.reciprocal %34 : vector<28x1xf32> -> vector<28x1xf32>
    %36 = arith.mulf %20, %35 : vector<28x1xf32>
    %37 = arith.addf %7, %1 : vector<28x1xf32>
    %38 = arith.mulf %22, %36 : vector<28x1xf32>
    %39 = arith.subf %37, %38 : vector<28x1xf32>
    %40 = vector.broadcast %36 : vector<28x1xf32> to vector<28x128xf32>
    %41 = arith.mulf %32, %40 : vector<28x128xf32>
    %42 = vector.broadcast %39 : vector<28x1xf32> to vector<28x128xf32>
    %43 = arith.addf %41, %42 : vector<28x128xf32>
    %c0_15 = arith.constant 0 : index
    %c0_16 = arith.constant 0 : index
    %44 = vector.load %arg5[%c0_15, %c0_16] : memref<28x128xf32, #tpu.memory_space<vmem>>, vector<28x128xf32>
    tpu.vector_store %arg5[%c0_15, %c0_16], %43 {strides = array<i32>} : memref<28x128xf32, #tpu.memory_space<vmem>>, vector<28x128xf32>,
    return
  }
  func.func @transform_0(%arg0: i32) -> (i32, i32) {
    %c0_i32 = arith.constant 0 : i32
    %c0_i32_0 = arith.constant 0 : i32
    return %arg0, %c0_i32 : i32, i32
  }
  func.func @transform_1(%arg0: i32) -> (i32, i32) {
    %c0_i32 = arith.constant 0 : i32
    %c0_i32_0 = arith.constant 0 : i32
    %c0_i32_1 = arith.constant 0 : i32
    return %c0_i32, %c0_i32_0 : i32, i32
  }
  func.func @transform_2(%arg0: i32) -> (i32, i32) {
    %c0_i32 = arith.constant 0 : i32
    %c0_i32_0 = arith.constant 0 : i32
    %c0_i32_1 = arith.constant 0 : i32
    return %c0_i32, %c0_i32_0 : i32, i32
  }
  func.func @transform_3(%arg0: i32) -> (i32, i32) {
    %c0_i32 = arith.constant 0 : i32
    %c0_i32_0 = arith.constant 0 : i32
    return %arg0, %c0_i32 : i32, i32
  }
  func.func @transform_4(%arg0: i32) -> (i32, i32) {
    %c0_i32 = arith.constant 0 : i32
    %c0_i32_0 = arith.constant 0 : i32
    return %arg0, %c0_i32 : i32, i32
  }
}

</mosaic_0001>

<llo_original>
// kernel: tpu_custom_call.1
$region0: #{tpu_custom_call.1}
  #allocation0 [shape = 'u32[]', space=smem, size = 0x4, offset = 0x4, fixed_abs, tag = 'smem constant byte address 0x4 - core index']
  #allocation1 [shape = 'u32[72,128]{1,0:T(1,128)}', space=vmem, size = 0x9000, scoped, tag = 'internal scratch']
  %s0 = inlined_call_operand.vmem [shape: f32[28,104], index: 0, kind: input, shape index: {}]
  %s1 = inlined_call_operand.hbm [shape: f32[104,128], index: 1, kind: input, shape index: {}]
  %s2 = inlined_call_operand.vmem [shape: f32[1,128], index: 2, kind: input, shape index: {}]
  %s3 = inlined_call_operand.vmem [shape: f32[28,2], index: 3, kind: input, shape index: {}]
  %s4 = inlined_call_operand.hbm [shape: f32[28,128], index: 4, kind: output, shape index: {}]
  %s5 = sld [smem:[#allocation0]]
  $region30: #{tpu_custom_call.1} parent=0
    _
  %s7 = ssub.s32 1, %s5
  %s8 = scalar_select 0, %s7, %s5
  $region1: #{tpu_custom_call.1} parent=0
    #allocation2 [shape = 'u8[53248]{0}', space=vmem, size = 0xd000, scoped, tag = 'input window, operand 1, single buffered']
    #allocation3 [shape = 's32[1]{0}', space=sflag, size = 0x4, scoped, tag = 'scoped memory for tpu_custom_call.1']
    #allocation4 [shape = 's32[1]{0}', space=sflag, size = 0x4, scoped, tag = 'scoped memory for tpu_custom_call.1']
    #allocation5 [shape = 'u8[16384]{0}', space=vmem, size = 0x4000, scoped, tag = 'output window, operand 0, single buffered']
    %9 = vsyncpa [#allocation3], 0
    %10 = vsyncpa [#allocation4], 0
    // Predicated region
    $region2: #{tpu_custom_call.1} parent=1 // pred_check
      _
    $region3: #{tpu_custom_call.1} parent=1 // pred_check_branch
      %12 = sbr.rel (0) target = $region5
    $region4: #{tpu_custom_call.1} parent=1 // pred_region
      _
    $region5: #{tpu_custom_call.1} parent=1 // pred_fallthru
      _
    // Predicated region
    $region6: #{tpu_custom_call.1} parent=1 // pred_check
      _
    $region7: #{tpu_custom_call.1} parent=1 // pred_check_branch
      %14 = sbr.rel (0) target = $region9
    $region8: #{tpu_custom_call.1} parent=1 // pred_region
      %16 = vsyncadd [#allocation3], 0
      %s17 = sshll.u32 %s1, 4
      %s18 = int_to_ptr.hbm [resolvable:$true] %s17
      %s19 = sshll.u32 [#allocation2], 4
      %s20 = int_to_ptr.vmem [resolvable:$true] %s19
      %25 = dma.hbm_to_vmem [thread:$0]  %s18, 1664, %s20, [#allocation3], 128, 128, 8
    $region9: #{tpu_custom_call.1} parent=1 // pred_fallthru
      _
    // Predicated region
    $region10: #{tpu_custom_call.1} parent=1 // pred_check
      _
    $region11: #{tpu_custom_call.1} parent=1 // pred_check_branch
      %27 = sbr.rel (0) target = $region13
    $region12: #{tpu_custom_call.1} parent=1 // pred_region
      _
    $region13: #{tpu_custom_call.1} parent=1 // pred_fallthru
      _
    // Predicated region
    $region14: #{tpu_custom_call.1} parent=1 // pred_check
      _
    $region15: #{tpu_custom_call.1} parent=1 // pred_check_branch
      %29 = sbr.rel (0) target = $region17
    $region16: #{tpu_custom_call.1} parent=1 // pred_region
      _
    $region17: #{tpu_custom_call.1} parent=1 // pred_fallthru
      _
    // Predicated region
    $region18: #{tpu_custom_call.1} parent=1 // pred_check
      _
    $region19: #{tpu_custom_call.1} parent=1 // pred_check_branch
      %31 = sbr.rel (0) target = $region21
    $region20: #{tpu_custom_call.1} parent=1 // pred_region
      %33 = dma.done [#allocation3], 1664
    $region21: #{tpu_custom_call.1} parent=1 // pred_fallthru
      _
    %v34 = vld [vmem:[%s0] sm:$0xff]
    %v35 = vld [vmem:[%s0 + $0x8] sm:$0xff]
    %v36 = vld [vmem:[%s0 + $0x10] sm:$0xff]
    %v37 = vld [vmem:[%s0 + $0x18] sm:$0xf]
    %39 = vset.pattern.permute.xlu0 103
    %40 = vperm.xlu0 %39, %v34
    %v41 = vpop.permute.xlu0 %40
    %44 = vset.pattern.permute.xlu0 103
    %45 = vperm.xlu0 %44, %v35
    %v46 = vpop.permute.xlu0 %45
    %49 = vset.pattern.permute.xlu0 103
    %50 = vperm.xlu0 %49, %v36
    %v51 = vpop.permute.xlu0 %50
    %54 = vset.pattern.permute.xlu0 103
    %55 = vperm.xlu0 %54, %v37
    %v56 = vpop.permute.xlu0 %55
    %v58 = vsub.f32 %v34, %v41
    %v59 = vsub.f32 %v35, %v46
    %v60 = vsub.f32 %v36, %v51
    %v61 = vsub.f32 %v37, %v56
    %vm62 = vcmask 850944
    %v63 = vsel %vm62, %v58, 0.0
    %64 = vadd.xlane.f32.xlu0 %v63
    %v65 = vpop.xlane.xlu0 %64
    %v66 = vsel %vm62, %v59, 0.0
    %67 = vadd.xlane.f32.xlu0 %v66
    %v68 = vpop.xlane.xlu0 %67
    %v69 = vsel %vm62, %v60, 0.0
    %70 = vadd.xlane.f32.xlu0 %v69
    %v71 = vpop.xlane.xlu0 %70
    %vm72 = vcmask 846848
    %v73 = vsel %vm72, %v61, 0.0
    %74 = vadd.xlane.f32.xlu0 %v73
    %v75 = vpop.xlane.xlu0 %74
    %v76 = vrcp.pop 104.0
    %v77 = vmul.f32 104.0, %v76
    %v78 = vsub.f32 1.0, %v77
    %v79 = vmul.f32 %v76, %v78
    %v80 = vadd.f32 %v76, %v79
    %vm81 = vweird.f32 %v76
    %v82 = vsel %vm81, %v76, %v80
    %v83 = vmul.f32 %v65, %v82
    %v84 = vmul.f32 %v68, %v82
    %v85 = vmul.f32 %v71, %v82
    %v86 = vmul.f32 %v75, %v82
    %v87 = vsub.f32 %v58, %v83
    %v88 = vsub.f32 %v59, %v84
    %v89 = vsub.f32 %v60, %v85
    %v90 = vsub.f32 %v61, %v86
    %v91 = vmul.f32 %v87, %v87
    %v92 = vmul.f32 %v88, %v88
    %v93 = vmul.f32 %v89, %v89
    %v94 = vmul.f32 %v90, %v90
    %v95 = vsel %vm62, %v91, 0.0
    %96 = vadd.xlane.f32.xlu0 %v95
    %v97 = vpop.xlane.xlu0 %96
    %v98 = vsel %vm62, %v92, 0.0
    %99 = vadd.xlane.f32.xlu0 %v98
    %v100 = vpop.xlane.xlu0 %99
    %v101 = vsel %vm62, %v93, 0.0
    %102 = vadd.xlane.f32.xlu0 %v101
    %v103 = vpop.xlane.xlu0 %102
    %v104 = vsel %vm72, %v94, 0.0
    %105 = vadd.xlane.f32.xlu0 %v104
    %v106 = vpop.xlane.xlu0 %105
    %v107 = vmul.f32 %v97, %v82
    %v108 = vmul.f32 %v100, %v82
    %v109 = vmul.f32 %v103, %v82
    %v110 = vmul.f32 %v106, %v82
    %v111 = vadd.f32 %v107, 1e-05
    %v112 = vadd.f32 %v108, 1e-05
    %v113 = vadd.f32 %v109, 1e-05
    %v114 = vadd.f32 %v110, 1e-05
    %v115 = vrsqrt.pop %v111
    %v116 = vmul.f32 %v115, %v111
    %v117 = vmul.f32 %v116, %v115
    %v118 = vmul.f32 0.5, %v117
    %v119 = vsub.f32 1.5, %v118
    %v120 = vmul.f32 %v115, %v119
    %vm121 = vweird.f32 %v111
    %vm122 = vweird.f32 %v115
    %vm123 = vmor %vm121, %vm122
    %v124 = vsel %vm123, %v115, %v120
    %v125 = vrsqrt.pop %v112
    %v126 = vmul.f32 %v125, %v112
    %v127 = vmul.f32 %v126, %v125
    %v128 = vmul.f32 0.5, %v127
    %v129 = vsub.f32 1.5, %v128
    %v130 = vmul.f32 %v125, %v129
    %vm131 = vweird.f32 %v112
    %vm132 = vweird.f32 %v125
    %vm133 = vmor %vm131, %vm132
    %v134 = vsel %vm133, %v125, %v130
    %v135 = vrsqrt.pop %v113
    %v136 = vmul.f32 %v135, %v113
    %v137 = vmul.f32 %v136, %v135
    %v138 = vmul.f32 0.5, %v137
    %v139 = vsub.f32 1.5, %v138
    %v140 = vmul.f32 %v135, %v139
    %vm141 = vweird.f32 %v113
    %vm142 = vweird.f32 %v135
    %vm143 = vmor %vm141, %vm142
    %v144 = vsel %vm143, %v135, %v140
    %v145 = vrsqrt.pop %v114
    %v146 = vmul.f32 %v145, %v114
    %v147 = vmul.f32 %v146, %v145
    %v148 = vmul.f32 0.5, %v147
    %v149 = vsub.f32 1.5, %v148
    %v150 = vmul.f32 %v145, %v149
    %vm151 = vweird.f32 %v114
    %vm152 = vweird.f32 %v145
    %vm153 = vmor %vm151, %vm152
    %v154 = vsel %vm153, %v145, %v150
    %v155 = vrsqrt.pop %v111
    %v156 = vmul.f32 %v155, %v111
    %v157 = vmul.f32 %v156, %v155
    %v158 = vmul.f32 0.5, %v157
    %v159 = vsub.f32 1.5, %v158
    %v160 = vmul.f32 %v155, %v159
    %v161 = vmul.f32 %v111, %v160
    %vm162 = vcmp.eq.f32.partialorder %v111, inf
    %v163 = vsel %vm162, %v111, %v161
    %vm164 = vcmp.eq.f32.partialorder %v111, 0.0
    %v165 = vand.u32 %v111, 2147483648
    %v166 = vsel %vm164, %v165, %v163
    %v167 = vrsqrt.pop %v112
    %v168 = vmul.f32 %v167, %v112
    %v169 = vmul.f32 %v168, %v167
    %v170 = vmul.f32 0.5, %v169
    %v171 = vsub.f32 1.5, %v170
    %v172 = vmul.f32 %v167, %v171
    %v173 = vmul.f32 %v112, %v172
    %vm174 = vcmp.eq.f32.partialorder %v112, inf
    %v175 = vsel %vm174, %v112, %v173
    %vm176 = vcmp.eq.f32.partialorder %v112, 0.0
    %v177 = vand.u32 %v112, 2147483648
    %v178 = vsel %vm176, %v177, %v175
    %v179 = vrsqrt.pop %v113
    %v180 = vmul.f32 %v179, %v113
    %v181 = vmul.f32 %v180, %v179
    %v182 = vmul.f32 0.5, %v181
    %v183 = vsub.f32 1.5, %v182
    %v184 = vmul.f32 %v179, %v183
    %v185 = vmul.f32 %v113, %v184
    %vm186 = vcmp.eq.f32.partialorder %v113, inf
    %v187 = vsel %vm186, %v113, %v185
    %vm188 = vcmp.eq.f32.partialorder %v113, 0.0
    %v189 = vand.u32 %v113, 2147483648
    %v190 = vsel %vm188, %v189, %v187
    %v191 = vrsqrt.pop %v114
    %v192 = vmul.f32 %v191, %v114
    %v193 = vmul.f32 %v192, %v191
    %v194 = vmul.f32 0.5, %v193
    %v195 = vsub.f32 1.5, %v194
    %v196 = vmul.f32 %v191, %v195
    %v197 = vmul.f32 %v114, %v196
    %vm198 = vcmp.eq.f32.partialorder %v114, inf
    %v199 = vsel %vm198, %v114, %v197
    %vm200 = vcmp.eq.f32.partialorder %v114, 0.0
    %v201 = vand.u32 %v114, 2147483648
    %v202 = vsel %vm200, %v201, %v199
    %v203 = vld [vmem:[%s3] sm:$0xff]
    %v204 = vld [vmem:[%s3 + $0x8] sm:$0xff]
    %v205 = vld [vmem:[%s3 + $0x10] sm:$0xff]
    %v206 = vld [vmem:[%s3 + $0x18] sm:$0xf]
    %v207 = vmul.f32 %v203, %v124
    %v208 = vmul.f32 %v204, %v134
    %v209 = vmul.f32 %v205, %v144
    %v210 = vmul.f32 %v206, %v154
    %212 = vset.pattern.permute.xlu0 0
    %213 = vperm.xlu0 %212, %v207
    %v214 = vpop.permute.xlu0 %213
    %217 = vset.pattern.permute.xlu0 0
    %218 = vperm.xlu0 %217, %v208
    %v219 = vpop.permute.xlu0 %218
    %222 = vset.pattern.permute.xlu0 0
    %223 = vperm.xlu0 %222, %v209
    %v224 = vpop.permute.xlu0 %223
    %227 = vset.pattern.permute.xlu0 0
    %228 = vperm.xlu0 %227, %v210
    %v229 = vpop.permute.xlu0 %228
    %v231 = vmul.f32 %v87, %v214
    %v232 = vmul.f32 %v88, %v219
    %v233 = vmul.f32 %v89, %v224
    %v234 = vmul.f32 %v90, %v229
    %236 = vset.pattern.permute.xlu0 1
    %237 = vperm.xlu0 %236, %v203
    %v238 = vpop.permute.xlu0 %237
    %241 = vset.pattern.permute.xlu0 1
    %242 = vperm.xlu0 %241, %v204
    %v243 = vpop.permute.xlu0 %242
    %246 = vset.pattern.permute.xlu0 1
    %247 = vperm.xlu0 %246, %v205
    %v248 = vpop.permute.xlu0 %247
    %251 = vset.pattern.permute.xlu0 1
    %252 = vperm.xlu0 %251, %v206
    %v253 = vpop.permute.xlu0 %252
    %v255 = vadd.f32 %v231, %v238
    %v256 = vadd.f32 %v232, %v243
    %v257 = vadd.f32 %v233, %v248
    %v258 = vadd.f32 %v234, %v253
    %v259 = vld [vmem:[#allocation2] sm:$0xff]
    %v260 = vld [vmem:[#allocation2 + $0x8] sm:$0xff]
    %v261 = vld [vmem:[#allocation2 + $0x10] sm:$0xff]
    %v262 = vld [vmem:[#allocation2 + $0x18] sm:$0xff]
    %v263 = vld [vmem:[#allocation2 + $0x20] sm:$0xff]
    %v264 = vld [vmem:[#allocation2 + $0x28] sm:$0xff]
    %v265 = vld [vmem:[#allocation2 + $0x30] sm:$0xff]
    %v266 = vld [vmem:[#allocation2 + $0x38] sm:$0xff]
    %v267 = vld [vmem:[#allocation2 + $0x40] sm:$0xff]
    %v268 = vld [vmem:[#allocation2 + $0x48] sm:$0xff]
    %v269 = vld [vmem:[#allocation2 + $0x50] sm:$0xff]
    %v270 = vld [vmem:[#allocation2 + $0x58] sm:$0xff]
    %v271 = vld [vmem:[#allocation2 + $0x60] sm:$0xff]
    %v272 = vld [vmem:[%s2] sm:$0x1]
    %v274 = vperm.slane %v272, 0
    %v277 = vsel %vm62, %v255, 0
    %v280 = vsel %vm62, %v256, 0
    %v283 = vsel %vm62, %v257, 0
    %v286 = vsel %vm62, %v258, 0
    %288 = vmatpush.msra.mxu0 0.0
    %289 = vmatpush.msra.mxu0 0.0
    %290 = vmatpush.msra.mxu0 0.0
    %291 = vmatpush.msra.mxu0 %v271
    %292 = vmatpush.msra.mxu0 %v270
    %293 = vmatpush.msra.mxu0 %v269
    %294 = vmatpush.msra.mxu0 %v268
    %295 = vmatpush.msra.mxu0 %v267
    %296 = vmatpush.msra.mxu0 %v266
    %297 = vmatpush.msra.mxu0 %v265
    %298 = vmatpush.msra.mxu0 %v264
    %299 = vmatpush.msra.mxu0 %v263
    %300 = vmatpush.msra.mxu0 %v262
    %301 = vmatpush.msra.mxu0 %v261
    %302 = vmatpush.msra.mxu0 %v260
    %303 = vmatpush.msra.mxu0 %v259
    %304 = vmatmul.f32.gmra.mxu0 %v277
    %v305 = vpop.f32.mrf.mxu0
    %v306 = vadd.f32 %v274, %v305
    %307 = vmatmul.f32.gmra.mxu0 %v280
    %v308 = vpop.f32.mrf.mxu0
    %v309 = vadd.f32 %v274, %v308
    %310 = vmatmul.f32.gmra.mxu0 %v283
    %v311 = vpop.f32.mrf.mxu0
    %v312 = vadd.f32 %v274, %v311
    %313 = vmatmul.f32.gmra.mxu0 %v286
    %v314 = vpop.f32.mrf.mxu0
    %v315 = vadd.f32 %v274, %v314
    %316 = vdwg.mxu0
    %v317 = vadd.f32 %v203, 1e-10
    %v318 = vadd.f32 %v204, 1e-10
    %v319 = vadd.f32 %v205, 1e-10
    %v320 = vadd.f32 %v206, 1e-10
    %v321 = vrcp.pop %v317
    %v322 = vmul.f32 %v317, %v321
    %v323 = vsub.f32 1.0, %v322
    %v324 = vmul.f32 %v321, %v323
    %v325 = vadd.f32 %v321, %v324
    %vm326 = vweird.f32 %v317
    %vm327 = vweird.f32 %v321
    %vm328 = vmor %vm326, %vm327
    %v329 = vsel %vm328, %v321, %v325
    %v330 = vand.u32 2147483647, %v317
    %vm331 = vcmp.eq.f32.partialorder %v330, 8.507059e+37
    %v332 = vand.u32 %v317, 2147483648
    %v333 = vor.u32 1.1754944e-38, %v332
    %v334 = vsel %vm331, %v333, %v329
    %v335 = vrcp.pop %v318
    %v336 = vmul.f32 %v318, %v335
    %v337 = vsub.f32 1.0, %v336
    %v338 = vmul.f32 %v335, %v337
    %v339 = vadd.f32 %v335, %v338
    %vm340 = vweird.f32 %v318
    %vm341 = vweird.f32 %v335
    %vm342 = vmor %vm340, %vm341
    %v343 = vsel %vm342, %v335, %v339
    %v344 = vand.u32 2147483647, %v318
    %vm345 = vcmp.eq.f32.partialorder %v344, 8.507059e+37
    %v346 = vand.u32 %v318, 2147483648
    %v347 = vor.u32 1.1754944e-38, %v346
    %v348 = vsel %vm345, %v347, %v343
    %v349 = vrcp.pop %v319
    %v350 = vmul.f32 %v319, %v349
    %v351 = vsub.f32 1.0, %v350
    %v352 = vmul.f32 %v349, %v351
    %v353 = vadd.f32 %v349, %v352
    %vm354 = vweird.f32 %v319
    %vm355 = vweird.f32 %v349
    %vm356 = vmor %vm354, %vm355
    %v357 = vsel %vm356, %v349, %v353
    %v358 = vand.u32 2147483647, %v319
    %vm359 = vcmp.eq.f32.partialorder %v358, 8.507059e+37
    %v360 = vand.u32 %v319, 2147483648
    %v361 = vor.u32 1.1754944e-38, %v360
    %v362 = vsel %vm359, %v361, %v357
    %v363 = vrcp.pop %v320
    %v364 = vmul.f32 %v320, %v363
    %v365 = vsub.f32 1.0, %v364
    %v366 = vmul.f32 %v363, %v365
    %v367 = vadd.f32 %v363, %v366
    %vm368 = vweird.f32 %v320
    %vm369 = vweird.f32 %v363
    %vm370 = vmor %vm368, %vm369
    %v371 = vsel %vm370, %v363, %v367
    %v372 = vand.u32 2147483647, %v320
    %vm373 = vcmp.eq.f32.partialorder %v372, 8.507059e+37
    %v374 = vand.u32 %v320, 2147483648
    %v375 = vor.u32 1.1754944e-38, %v374
    %v376 = vsel %vm373, %v375, %v371
    %v377 = vmul.f32 %v166, %v334
    %v378 = vmul.f32 %v178, %v348
    %v379 = vmul.f32 %v190, %v362
    %v380 = vmul.f32 %v202, %v376
    %v381 = vadd.f32 %v83, %v34
    %v382 = vadd.f32 %v84, %v35
    %v383 = vadd.f32 %v85, %v36
    %v384 = vadd.f32 %v86, %v37
    %389 = vrot.lane.b32.xlu0 %v377, 1
    %v390 = vpop.permute.xlu0 %389
    %391 = vrot.lane.b32.xlu0 %v378, 1
    %v392 = vpop.permute.xlu0 %391
    %393 = vrot.lane.b32.xlu0 %v379, 1
    %v394 = vpop.permute.xlu0 %393
    %395 = vrot.lane.b32.xlu0 %v380, 1
    %v396 = vpop.permute.xlu0 %395
    %v401 = vmul.f32 %v203, %v390
    %v402 = vmul.f32 %v204, %v392
    %v403 = vmul.f32 %v205, %v394
    %v404 = vmul.f32 %v206, %v396
    %409 = vrot.lane.b32.xlu0 %v401, 102
    %v410 = vpop.permute.xlu0 %409
    %411 = vrot.lane.b32.xlu0 %v402, 102
    %v412 = vpop.permute.xlu0 %411
    %413 = vrot.lane.b32.xlu0 %v403, 102
    %v414 = vpop.permute.xlu0 %413
    %415 = vrot.lane.b32.xlu0 %v404, 102
    %v416 = vpop.permute.xlu0 %415
    %v421 = vsub.f32 %v381, %v410
    %v422 = vsub.f32 %v382, %v412
    %v423 = vsub.f32 %v383, %v414
    %v424 = vsub.f32 %v384, %v416
    %425 = vset.pattern.permute.xlu0 0
    %426 = vperm.xlu0 %425, %v377
    %v427 = vpop.permute.xlu0 %426
    %429 = vset.pattern.permute.xlu0 0
    %430 = vperm.xlu0 %429, %v378
    %v431 = vpop.permute.xlu0 %430
    %433 = vset.pattern.permute.xlu0 0
    %434 = vperm.xlu0 %433, %v379
    %v435 = vpop.permute.xlu0 %434
    %437 = vset.pattern.permute.xlu0 0
    %438 = vperm.xlu0 %437, %v380
    %v439 = vpop.permute.xlu0 %438
    %v441 = vmul.f32 %v306, %v427
    %v442 = vmul.f32 %v309, %v431
    %v443 = vmul.f32 %v312, %v435
    %v444 = vmul.f32 %v315, %v439
    %446 = vset.pattern.permute.xlu0 103
    %447 = vperm.xlu0 %446, %v421
    %v448 = vpop.permute.xlu0 %447
    %451 = vset.pattern.permute.xlu0 103
    %452 = vperm.xlu0 %451, %v422
    %v453 = vpop.permute.xlu0 %452
    %456 = vset.pattern.permute.xlu0 103
    %457 = vperm.xlu0 %456, %v423
    %v458 = vpop.permute.xlu0 %457
    %461 = vset.pattern.permute.xlu0 103
    %462 = vperm.xlu0 %461, %v424
    %v463 = vpop.permute.xlu0 %462
    %v465 = vadd.f32 %v441, %v448
    %v466 = vadd.f32 %v442, %v453
    %v467 = vadd.f32 %v443, %v458
    %v468 = vadd.f32 %v444, %v463
    %469 = vst [vmem:[#allocation5] sm:$0xff] %v465
    %470 = vst [vmem:[#allocation5 + $0x8] sm:$0xff] %v466
    %471 = vst [vmem:[#allocation5 + $0x10] sm:$0xff] %v467
    %472 = vst [vmem:[#allocation5 + $0x18] sm:$0xf] %v468
    // Predicated region
    $region22: #{tpu_custom_call.1} parent=1 // pred_check
      _
    $region23: #{tpu_custom_call.1} parent=1 // pred_check_branch
      %474 = sbr.rel (0) target = $region25
    $region24: #{tpu_custom_call.1} parent=1 // pred_region
      %476 = vsyncadd [#allocation4], 0
      %s477 = sshll.u32 [#allocation5], 4
      %s478 = int_to_ptr.vmem [resolvable:$true] %s477
      %s479 = sshll.u32 %s4, 4
      %s480 = int_to_ptr.hbm [resolvable:$true] %s479
      %485 = dma.vmem_to_hbm [thread:$0]  %s478, 512, %s480, [#allocation4], 128, 128, 8
    $region25: #{tpu_custom_call.1} parent=1 // pred_fallthru
      _
    // Predicated region
    $region26: #{tpu_custom_call.1} parent=1 // pred_check
      _
    $region27: #{tpu_custom_call.1} parent=1 // pred_check_branch
      %487 = sbr.rel (0) target = $region29
    $region28: #{tpu_custom_call.1} parent=1 // pred_region
      %489 = dma.done [#allocation4], 512
    $region29: #{tpu_custom_call.1} parent=1 // pred_fallthru
      _
    %490 = vsyncpa [#allocation3], 1
    %491 = vsyncpa [#allocation4], 1

</llo_original>
